<compile_context>
chip_gen: v7x
topology: tpu7x:2x2x1
jax: 0.10.0
libtpu: 0.0.40
codegen_flags: <defaults>
</compile_context>

<pallas_src>
import functools

import jax
import jax.numpy as jnp
from jax import lax
from jax.experimental import pallas as pl
from jax.experimental.pallas import tpu as pltpu


def _round_up(x, m):
    return ((x + m - 1) // m) * m


def _vq_kernel(h_ref, w_ref, b_ref, cv_ref, out_ref, cnt_ref, *, num_groups, v_pad, dg):
    """One grid step processes a (tn, H) tile of tokens.

    h_ref  : (tn, H)          f32/bf16  token tile (streamed; cast to bf16 on-chip)
    w_ref  : (H, G*Vp)        bf16      lane-padded projection weight (resident)
    b_ref  : (1, G*Vp)        f32       lane-padded bias (-1e30 on pad lanes)
    cv_ref : (3, G, Vp, Dg)   bf16      hi/mid/lo split of the f32 codebook (resident)
    out_ref: (tn, G*Dg)       f32       quantized output tile (lane-dense block)
    cnt_ref: (1, 1, G*Vp)     f32       per-tile one-hot counts (pad rows corrected outside)
    """
    tn = h_ref.shape[0]
    G, Vp, Dg = num_groups, v_pad, dg

    # Cast the streamed token tile on-chip (VPU, hidden under the vld) -- the wrapper does
    # not pre-cast, so HBM traffic for the token stream is a single pass.
    h_bf = h_ref[...].astype(jnp.bfloat16)

    # Projection on the MXU: bf16 operands, f32 accumulation; argmax runs on f32 logits.
    logits = jnp.dot(h_bf, w_ref[...], preferred_element_type=jnp.float32) + b_ref[...]

    iota_v = lax.broadcasted_iota(jnp.int32, (tn, Vp), 1)   # one (tn, Vp) iota, shared by groups

    for g in range(G):                                      # static tiny loop (typically G == 2)
        lg = logits[:, g * Vp:(g + 1) * Vp]                 # lane-aligned slice (Vp % 128 == 0)
        mx = jnp.max(lg, axis=-1, keepdims=True)
        # First-index tie-break == torch.argmax; pad lanes hold -1e30 so they never win.
        idx = jnp.min(jnp.where(lg == mx, iota_v, Vp), axis=-1, keepdims=True)
        sel = iota_v == idx                                  # (tn, Vp) hard one-hot (bool)

        # Per-tile marginal counts (no padding mask in the hot path; wrapper corrects).
        cnt_ref[:, :, g * Vp:(g + 1) * Vp] = (
            jnp.sum(sel.astype(jnp.float32), axis=0, keepdims=True).reshape(1, 1, Vp))

        # Exact codebook lookup: the one-hot is exact in bf16, and the f32 codebook was
        # pre-split into hi/mid/lo bf16 planes -> 3 single-pass bf16 MXU matmuls reconstruct
        # the selected f32 codevector row to within ~1 ulp. This avoids emulated-f32 matmul
        # passes and never multiplies against other groups' zero blocks.
        oh = sel.astype(jnp.bfloat16)
        og = (jnp.dot(oh, cv_ref[0, g], preferred_element_type=jnp.float32)
              + jnp.dot(oh, cv_ref[1, g], preferred_element_type=jnp.float32)
              + jnp.dot(oh, cv_ref[2, g], preferred_element_type=jnp.float32))
        # Lane-dense unmasked store when Dg % 128 == 0 (common case Dg=128); tiny configs
        # fall back to a masked partial store into the VMEM block (HBM writeback of the
        # whole (tn, D) block stays one dense DMA either way).
        out_ref[:, g * Dg:(g + 1) * Dg] = og.astype(out_ref.dtype)


def prepare_vq_params(w_proj, b_proj, codevectors, *, num_groups, num_vars):
    """One-time operand prep (hoist out of the per-step path; run once per checkpoint).

    w_proj      : (H, G*V)      f32  (transposed nn.Linear weight)
    b_proj      : (G*V,)        f32  nn.Linear bias
    codevectors : (1, G*V, Dg)  f32
    """
    G, V = num_groups, num_vars
    H = w_proj.shape[0]
    Dg = codevectors.shape[-1]
    Vp = _round_up(V, 128)                       # lane-align every per-group slice

    w = jnp.pad(w_proj.reshape(H, G, V).astype(jnp.float32),
                ((0, 0), (0, 0), (0, Vp - V))).reshape(H, G * Vp).astype(jnp.bfloat16)
    b = jnp.pad(b_proj.reshape(G, V).astype(jnp.float32),
                ((0, 0), (0, Vp - V)), constant_values=-1e30).reshape(1, G * Vp)

    cv = jnp.pad(codevectors.reshape(G, V, Dg).astype(jnp.float32),
                 ((0, 0), (0, Vp - V), (0, 0)))                      # (G, Vp, Dg) f32
    cv_hi = cv.astype(jnp.bfloat16)
    r1 = cv - cv_hi.astype(jnp.float32)
    cv_mid = r1.astype(jnp.bfloat16)
    cv_lo = (r1 - cv_mid.astype(jnp.float32)).astype(jnp.bfloat16)
    cv_split = jnp.stack([cv_hi, cv_mid, cv_lo], axis=0)             # (3, G, Vp, Dg) bf16

    # Zero-padded token rows get logits == bias, so each selects argmax(bias) per group
    # (first-index tie-break). Precompute its one-hot for the wrapper-side count correction.
    pad_onehot = jax.nn.one_hot(jnp.argmax(b_proj.reshape(G, V), axis=-1), V,
                                dtype=jnp.float32)                   # (G, V)

    return dict(w=w, b=b, cv=cv_split, pad_onehot=pad_onehot,
                num_groups=G, num_vars=V, v_pad=Vp, dg=Dg)


def conformer_gumbel_vq_forward(hidden_states, params, *, tn=1024, out_dtype=jnp.float32):
    """Eval-mode forward. hidden_states: (B, S, H). Returns ((B, S, D), perplexity)."""
    B, S, H = hidden_states.shape
    N = B * S
    G, V, Vp, Dg = params['num_groups'], params['num_vars'], params['v_pad'], params['dg']
    GVp = G * Vp
    D = G * Dg

    # Hardware-sized token tile (multiple of 16 for bf16 sublane packing). Shrink so the
    # "parallel" grid has >= 2 tiles when possible (keeps both v7x TensorCores busy; the
    # ~0.35 us/step overhead elsewhere is negligible).
    tn_cap = _round_up(max(pl.cdiv(N, 2), 16), 16)
    tn = max(16, min(_round_up(int(tn), 16), tn_cap))
    num_tiles = pl.cdiv(N, tn)
    n_pad = num_tiles * tn

    h2 = hidden_states.reshape(N, H)
    if n_pad != N:
        h2 = jnp.pad(h2, ((0, n_pad - N), (0, 0)))   # zero rows; counts corrected below

    # VMEM budget: double-buffered streamed tiles + resident operands + in-kernel
    # temporaries (logits / iota / one-hot / per-group partials), capped below the physical
    # VMEM of the current generation (64 MiB v7x, 128 MiB v5e/v6e) with headroom.
    hb = h2.dtype.itemsize
    ob = jnp.dtype(out_dtype).itemsize
    stream = tn * H * hb + tn * D * ob + GVp * 4
    resident = H * GVp * 2 + GVp * 4 + 3 * G * Vp * Dg * 2
    temps = tn * GVp * 4 + 3 * tn * Vp * 4 + tn * H * 2 + 2 * tn * Dg * 4
    est = 2 * stream + 2 * resident + temps
    try:
        phys = int(pltpu.get_tpu_info().vmem_capacity_bytes)
    except Exception:
        phys = 64 * 1024 * 1024                      # conservative default: v7x per-TC VMEM
    cap = max(32 * 1024 * 1024, phys - 10 * 1024 * 1024)
    vmem_limit = int(min(cap, max(32 * 1024 * 1024, 2 * est)))

    kernel = functools.partial(_vq_kernel, num_groups=G, v_pad=Vp, dg=Dg)

    # TODO(synk): resident operands (w/b/cv) could use pipeline_mode=pl.Buffered(1) to
    #             reclaim a little extra VMEM on v7x; kept at default buffering for safety.
    out, counts = pl.pallas_call(
        kernel,
        out_shape=(jax.ShapeDtypeStruct((n_pad, D), out_dtype),
                   jax.ShapeDtypeStruct((num_tiles, 1, GVp), jnp.float32)),
        grid_spec=pltpu.PrefetchScalarGridSpec(
            num_scalar_prefetch=0,
            grid=(num_tiles,),
            in_specs=[
                pl.BlockSpec((tn, H), lambda i: (i, 0)),               # token tile (streamed)
                pl.BlockSpec((H, GVp), lambda i: (0, 0)),              # projection weight
                pl.BlockSpec((1, GVp), lambda i: (0, 0)),              # projection bias
                pl.BlockSpec((3, G, Vp, Dg), lambda i: (0, 0, 0, 0)),  # split codebook
            ],
            out_specs=[
                pl.BlockSpec((tn, D), lambda i: (i, 0)),               # quantized tile
                pl.BlockSpec((1, 1, GVp), lambda i: (i, 0, 0)),        # per-tile counts
            ],
        ),
        compiler_params=pltpu.CompilerParams(
            dimension_semantics=("parallel",),       # no carried state -> megacore friendly
            vmem_limit_bytes=vmem_limit),
    )(h2, params['w'], params['b'], params['cv'])

    out = out[:N].reshape(B, S, D)

    # Perplexity from exact per-tile counts (mask_time_indices=None path). All padded rows
    # selected argmax(bias) per group; subtract them here instead of masking every tile.
    counts = counts.reshape(num_tiles, G, Vp)[..., :V].sum(axis=0)        # (G, V)
    counts = counts - jnp.float32(n_pad - N) * params['pad_onehot']
    marg = counts / jnp.float32(N)
    perplexity = jnp.sum(jnp.exp(-jnp.sum(marg * jnp.log(marg + 1e-7), axis=-1)))
    return out, perplexity


def conformer_gumbel_vq(hidden_states, w_proj, b_proj, codevectors, *, num_groups, num_vars,
                        tn=1024, out_dtype=jnp.float32):
    params = prepare_vq_params(w_proj, b_proj, codevectors,
                               num_groups=num_groups, num_vars=num_vars)
    return conformer_gumbel_vq_forward(hidden_states, params, tn=tn, out_dtype=out_dtype)


def _ref_forward(hidden_states, w_proj, b_proj, codevectors, num_groups, num_vars):
    """Pure-JAX reference of the PyTorch eval path (bf16 projection like the kernel,
    exact f32 codevector gather for the lookup)."""
    B, S, H = hidden_states.shape
    G, V = num_groups, num_vars
    Dg = codevectors.shape[-1]
    h = hidden_states.reshape(-1, H).astype(jnp.bfloat16)
    w = w_proj.astype(jnp.bfloat16)
    logits = jnp.dot(h, w, preferred_element_type=jnp.float32) + b_proj.reshape(1, G * V)
    idx = jnp.argmax(logits.reshape(-1, V), axis=-1)                 # (N*G,)
    onehot = jax.nn.one_hot(idx, V, dtype=jnp.float32).reshape(-1, G, V)
    marg = onehot.mean(axis=0)
    ppl = jnp.sum(jnp.exp(-jnp.sum(marg * jnp.log(marg + 1e-7), axis=-1)))
    cv = codevectors.reshape(G, V, Dg)
    gathered = cv[jnp.arange(G)[None, :], idx.reshape(-1, G)]        # exact (N, G, Dg) gather
    out = gathered.reshape(B, S, G * Dg)
    return out, ppl


if __name__ == "__main__":
    def run_case(key, B, S, H, G, V, Dcv, tn):
        Dg = Dcv // G
        k1, k2, k3, k4 = jax.random.split(key, 4)
        hidden = jax.random.normal(k1, (B, S, H), dtype=jnp.float32)
        w_proj = jax.random.normal(k2, (H, G * V), dtype=jnp.float32) * 0.1   # Linear weight^T
        b_proj = jax.random.normal(k3, (G * V,), dtype=jnp.float32) * 0.1     # Linear bias
        codevectors = jax.random.normal(k4, (1, G * V, Dg), dtype=jnp.float32)

        out, ppl = conformer_gumbel_vq(hidden, w_proj, b_proj, codevectors,
                                       num_groups=G, num_vars=V, tn=tn)
        out, ppl = jax.block_until_ready((out, ppl))

        ref_out, ref_ppl = _ref_forward(hidden, w_proj, b_proj, codevectors, G, V)
        assert out.shape == (B, S, Dcv), out.shape
        assert jnp.allclose(out, ref_out, atol=1e-5), "codevector output mismatch"
        assert jnp.allclose(ppl, ref_ppl, atol=1e-5, rtol=1e-5), "perplexity mismatch"

    key = jax.random.PRNGKey(0)
    k_a, k_b = jax.random.split(key)

    # Small config: conv_dim[-1]=32, num_codevector_groups=2,
    # num_codevectors_per_group=8, codevector_dim=16.
    run_case(k_a, B=2, S=8, H=32, G=2, V=8, Dcv=16, tn=1024)

    # Non-divisible token count + multiple tiles (exercises the padded-row count correction
    # and the parallel multi-tile grid / per-tile counts reduction path).
    run_case(k_b, B=3, S=37, H=32, G=2, V=8, Dcv=16, tn=64)

    print("KERNEL_OK")
</pallas_src>

<mosaic_0001>
module attributes {stable_mosaic.version = 11 : i64} {
  func.func @_vq_kernel(%arg0: i32, %arg1: memref<16x32xf32, #tpu.memory_space<vmem>>, %arg2: memref<32x256xbf16, #tpu.memory_space<vmem>>, %arg3: memref<1x256xf32, #tpu.memory_space<vmem>>, %arg4: memref<3x2x128x8xbf16, #tpu.memory_space<vmem>>, %arg5: memref<16x16xf32, #tpu.memory_space<vmem>>, %arg6: memref<1x1x256xf32, #tpu.memory_space<vmem>>) attributes {dimension_semantics = [#tpu.dimension_semantics<parallel>], iteration_bounds = array<i64: 1>, scalar_prefetch = 0 : i64, scratch_operands = 0 : i64, tpu.core_type = #tpu.core_type<tc>, window_params = [{transform_indices = @transform_0, window_bounds = array<i64: 16, 32>}, {pipeline_mode = #tpu.pipeline_mode<synchronous>, transform_indices = @transform_1, window_bounds = array<i64: 32, 256>}, {pipeline_mode = #tpu.pipeline_mode<synchronous>, transform_indices = @transform_2, window_bounds = array<i64: 1, 256>}, {pipeline_mode = #tpu.pipeline_mode<synchronous>, transform_indices = @transform_3, window_bounds = array<i64: 3, 2, 128, 8>}, {transform_indices = @transform_4, window_bounds = array<i64: 16, 16>}, {transform_indices = @transform_5, window_bounds = array<i64: 1, 1, 256>}]} {
    %c0 = arith.constant 0 : index
    %c0_0 = arith.constant 0 : index
    %0 = vector.load %arg1[%c0, %c0_0] : memref<16x32xf32, #tpu.memory_space<vmem>>, vector<16x32xf32>
    %1 = arith.truncf %0 : vector<16x32xf32> to vector<16x32xbf16>
    %c0_1 = arith.constant 0 : index
    %c0_2 = arith.constant 0 : index
    %2 = vector.load %arg2[%c0_1, %c0_2] : memref<32x256xbf16, #tpu.memory_space<vmem>>, vector<32x256xbf16>
    %cst = arith.constant dense<0.000000e+00> : vector<16x256xf32>
    %3 = tpu.matmul %1, %2, %cst {dimension_numbers = #tpu.dot_dimension_numbers<[1], [0], [0], [1], [0, 0, 1, 1], [], []>} : vector<16x32xbf16>, vector<32x256xbf16>, vector<16x256xf32> -> vector<16x256xf32>
    %c0_3 = arith.constant 0 : index
    %c0_4 = arith.constant 0 : index
    %4 = vector.load %arg3[%c0_3, %c0_4] : memref<1x256xf32, #tpu.memory_space<vmem>>, vector<1x256xf32>
    %5 = vector.broadcast %4 : vector<1x256xf32> to vector<16x256xf32>
    %6 = arith.addf %3, %5 : vector<16x256xf32>
    %7 = tpu.iota {dimensions = array<i32: 1>} : vector<16x128xi32>
    %8 = vector.extract_strided_slice %6 {offsets = [0, 0], sizes = [16, 128], strides = [1, 1]} : vector<16x256xf32> to vector<16x128xf32>
    %cst_5 = arith.constant dense<0xFF800000> : vector<16xf32>
    %9 = vector.multi_reduction <maximumf>, %8, %cst_5 [1] : vector<16x128xf32> to vector<16xf32>
    %10 = vector.shape_cast %9 : vector<16xf32> to vector<16x1xf32>
    %11 = vector.broadcast %10 : vector<16x1xf32> to vector<16x128xf32>
    %12 = arith.cmpf oeq, %8, %11 : vector<16x128xf32>
    %c128_i32 = arith.constant 128 : i32
    %13 = vector.broadcast %c128_i32 : i32 to vector<16x128xi32>
    %14 = arith.select %12, %7, %13 : vector<16x128xi1>, vector<16x128xi32>
    %cst_6 = arith.constant dense<2147483647> : vector<16xi32>
    %15 = vector.multi_reduction <minsi>, %14, %cst_6 [1] : vector<16x128xi32> to vector<16xi32>
    %16 = vector.shape_cast %15 : vector<16xi32> to vector<16x1xi32>
    %17 = vector.broadcast %16 : vector<16x1xi32> to vector<16x128xi32>
    %18 = arith.cmpi eq, %7, %17 : vector<16x128xi32>
    %19 = arith.extui %18 : vector<16x128xi1> to vector<16x128xi32>
    %20 = arith.sitofp %19 : vector<16x128xi32> to vector<16x128xf32>
    %cst_7 = arith.constant dense<0.000000e+00> : vector<128xf32>
    %21 = vector.multi_reduction <add>, %20, %cst_7 [0] : vector<16x128xf32> to vector<128xf32>
    %22 = vector.shape_cast %21 : vector<128xf32> to vector<1x128xf32>
    %23 = vector.shape_cast %22 : vector<1x128xf32> to vector<1x1x128xf32>
    %c0_8 = arith.constant 0 : index
    %c0_9 = arith.constant 0 : index
    %c0_10 = arith.constant 0 : index
    %24 = vector.load %arg6[%c0_8, %c0_9, %c0_10] : memref<1x1x256xf32, #tpu.memory_space<vmem>>, vector<1x1x128xf32>
    tpu.vector_store %arg6[%c0_8, %c0_9, %c0_10], %23 {strides = array<i32>} : memref<1x1x256xf32, #tpu.memory_space<vmem>>, vector<1x1x128xf32>,
    %25 = arith.extui %18 : vector<16x128xi1> to vector<16x128xi32>
    %26 = arith.sitofp %25 : vector<16x128xi32> to vector<16x128xf32>
    %27 = arith.truncf %26 : vector<16x128xf32> to vector<16x128xbf16>
    %c0_11 = arith.constant 0 : index
    %c0_12 = arith.constant 0 : index
    %c0_13 = arith.constant 0 : index
    %c0_14 = arith.constant 0 : index
    %28 = vector.load %arg4[%c0_11, %c0_12, %c0_13, %c0_14] : memref<3x2x128x8xbf16, #tpu.memory_space<vmem>>, vector<1x1x128x8xbf16>
    %29 = vector.shape_cast %28 : vector<1x1x128x8xbf16> to vector<128x8xbf16>
    %cst_15 = arith.constant dense<0.000000e+00> : vector<16x8xf32>
    %30 = tpu.matmul %27, %29, %cst_15 {dimension_numbers = #tpu.dot_dimension_numbers<[1], [0], [0], [1], [0, 0, 1, 1], [], []>} : vector<16x128xbf16>, vector<128x8xbf16>, vector<16x8xf32> -> vector<16x8xf32>
    %c1 = arith.constant 1 : index
    %c0_16 = arith.constant 0 : index
    %c0_17 = arith.constant 0 : index
    %c0_18 = arith.constant 0 : index
    %31 = vector.load %arg4[%c1, %c0_16, %c0_17, %c0_18] : memref<3x2x128x8xbf16, #tpu.memory_space<vmem>>, vector<1x1x128x8xbf16>
    %32 = vector.shape_cast %31 : vector<1x1x128x8xbf16> to vector<128x8xbf16>
    %cst_19 = arith.constant dense<0.000000e+00> : vector<16x8xf32>
    %33 = tpu.matmul %27, %32, %cst_19 {dimension_numbers = #tpu.dot_dimension_numbers<[1], [0], [0], [1], [0, 0, 1, 1], [], []>} : vector<16x128xbf16>, vector<128x8xbf16>, vector<16x8xf32> -> vector<16x8xf32>
    %34 = arith.addf %30, %33 : vector<16x8xf32>
    %c2 = arith.constant 2 : index
    %c0_20 = arith.constant 0 : index
    %c0_21 = arith.constant 0 : index
    %c0_22 = arith.constant 0 : index
    %35 = vector.load %arg4[%c2, %c0_20, %c0_21, %c0_22] : memref<3x2x128x8xbf16, #tpu.memory_space<vmem>>, vector<1x1x128x8xbf16>
    %36 = vector.shape_cast %35 : vector<1x1x128x8xbf16> to vector<128x8xbf16>
    %cst_23 = arith.constant dense<0.000000e+00> : vector<16x8xf32>
    %37 = tpu.matmul %27, %36, %cst_23 {dimension_numbers = #tpu.dot_dimension_numbers<[1], [0], [0], [1], [0, 0, 1, 1], [], []>} : vector<16x128xbf16>, vector<128x8xbf16>, vector<16x8xf32> -> vector<16x8xf32>
    %38 = arith.addf %34, %37 : vector<16x8xf32>
    %c0_24 = arith.constant 0 : index
    %c0_25 = arith.constant 0 : index
    %39 = vector.load %arg5[%c0_24, %c0_25] : memref<16x16xf32, #tpu.memory_space<vmem>>, vector<16x8xf32>
    tpu.vector_store %arg5[%c0_24, %c0_25], %38 {strides = array<i32>} : memref<16x16xf32, #tpu.memory_space<vmem>>, vector<16x8xf32>,
    %40 = vector.extract_strided_slice %6 {offsets = [0, 128], sizes = [16, 128], strides = [1, 1]} : vector<16x256xf32> to vector<16x128xf32>
    %cst_26 = arith.constant dense<0xFF800000> : vector<16xf32>
    %41 = vector.multi_reduction <maximumf>, %40, %cst_26 [1] : vector<16x128xf32> to vector<16xf32>
    %42 = vector.shape_cast %41 : vector<16xf32> to vector<16x1xf32>
    %43 = vector.broadcast %42 : vector<16x1xf32> to vector<16x128xf32>
    %44 = arith.cmpf oeq, %40, %43 : vector<16x128xf32>
    %c128_i32_27 = arith.constant 128 : i32
    %45 = vector.broadcast %c128_i32_27 : i32 to vector<16x128xi32>
    %46 = arith.select %44, %7, %45 : vector<16x128xi1>, vector<16x128xi32>
    %cst_28 = arith.constant dense<2147483647> : vector<16xi32>
    %47 = vector.multi_reduction <minsi>, %46, %cst_28 [1] : vector<16x128xi32> to vector<16xi32>
    %48 = vector.shape_cast %47 : vector<16xi32> to vector<16x1xi32>
    %49 = vector.broadcast %48 : vector<16x1xi32> to vector<16x128xi32>
    %50 = arith.cmpi eq, %7, %49 : vector<16x128xi32>
    %51 = arith.extui %50 : vector<16x128xi1> to vector<16x128xi32>
    %52 = arith.sitofp %51 : vector<16x128xi32> to vector<16x128xf32>
    %cst_29 = arith.constant dense<0.000000e+00> : vector<128xf32>
    %53 = vector.multi_reduction <add>, %52, %cst_29 [0] : vector<16x128xf32> to vector<128xf32>
    %54 = vector.shape_cast %53 : vector<128xf32> to vector<1x128xf32>
    %55 = vector.shape_cast %54 : vector<1x128xf32> to vector<1x1x128xf32>
    %c0_30 = arith.constant 0 : index
    %c0_31 = arith.constant 0 : index
    %c128 = arith.constant 128 : index
    %56 = vector.load %arg6[%c0_30, %c0_31, %c128] : memref<1x1x256xf32, #tpu.memory_space<vmem>>, vector<1x1x128xf32>
    tpu.vector_store %arg6[%c0_30, %c0_31, %c128], %55 {strides = array<i32>} : memref<1x1x256xf32, #tpu.memory_space<vmem>>, vector<1x1x128xf32>,
    %57 = arith.extui %50 : vector<16x128xi1> to vector<16x128xi32>
    %58 = arith.sitofp %57 : vector<16x128xi32> to vector<16x128xf32>
    %59 = arith.truncf %58 : vector<16x128xf32> to vector<16x128xbf16>
    %c0_32 = arith.constant 0 : index
    %c1_33 = arith.constant 1 : index
    %c0_34 = arith.constant 0 : index
    %c0_35 = arith.constant 0 : index
    %60 = vector.load %arg4[%c0_32, %c1_33, %c0_34, %c0_35] : memref<3x2x128x8xbf16, #tpu.memory_space<vmem>>, vector<1x1x128x8xbf16>
    %61 = vector.shape_cast %60 : vector<1x1x128x8xbf16> to vector<128x8xbf16>
    %cst_36 = arith.constant dense<0.000000e+00> : vector<16x8xf32>
    %62 = tpu.matmul %59, %61, %cst_36 {dimension_numbers = #tpu.dot_dimension_numbers<[1], [0], [0], [1], [0, 0, 1, 1], [], []>} : vector<16x128xbf16>, vector<128x8xbf16>, vector<16x8xf32> -> vector<16x8xf32>
    %c1_37 = arith.constant 1 : index
    %c1_38 = arith.constant 1 : index
    %c0_39 = arith.constant 0 : index
    %c0_40 = arith.constant 0 : index
    %63 = vector.load %arg4[%c1_37, %c1_38, %c0_39, %c0_40] : memref<3x2x128x8xbf16, #tpu.memory_space<vmem>>, vector<1x1x128x8xbf16>
    %64 = vector.shape_cast %63 : vector<1x1x128x8xbf16> to vector<128x8xbf16>
    %cst_41 = arith.constant dense<0.000000e+00> : vector<16x8xf32>
    %65 = tpu.matmul %59, %64, %cst_41 {dimension_numbers = #tpu.dot_dimension_numbers<[1], [0], [0], [1], [0, 0, 1, 1], [], []>} : vector<16x128xbf16>, vector<128x8xbf16>, vector<16x8xf32> -> vector<16x8xf32>
    %66 = arith.addf %62, %65 : vector<16x8xf32>
    %c2_42 = arith.constant 2 : index
    %c1_43 = arith.constant 1 : index
    %c0_44 = arith.constant 0 : index
    %c0_45 = arith.constant 0 : index
    %67 = vector.load %arg4[%c2_42, %c1_43, %c0_44, %c0_45] : memref<3x2x128x8xbf16, #tpu.memory_space<vmem>>, vector<1x1x128x8xbf16>
    %68 = vector.shape_cast %67 : vector<1x1x128x8xbf16> to vector<128x8xbf16>
    %cst_46 = arith.constant dense<0.000000e+00> : vector<16x8xf32>
    %69 = tpu.matmul %59, %68, %cst_46 {dimension_numbers = #tpu.dot_dimension_numbers<[1], [0], [0], [1], [0, 0, 1, 1], [], []>} : vector<16x128xbf16>, vector<128x8xbf16>, vector<16x8xf32> -> vector<16x8xf32>
    %70 = arith.addf %66, %69 : vector<16x8xf32>
    %c0_47 = arith.constant 0 : index
    %c8 = arith.constant 8 : index
    %71 = vector.load %arg5[%c0_47, %c8] : memref<16x16xf32, #tpu.memory_space<vmem>>, vector<16x8xf32>
    tpu.vector_store %arg5[%c0_47, %c8], %70 {strides = array<i32>} : memref<16x16xf32, #tpu.memory_space<vmem>>, vector<16x8xf32>,
    return
  }
  func.func @transform_0(%arg0: i32) -> (i32, i32) {
    %c0_i32 = arith.constant 0 : i32
    %c0_i32_0 = arith.constant 0 : i32
    return %arg0, %c0_i32 : i32, i32
  }
  func.func @transform_1(%arg0: i32) -> (i32, i32) {
    %c0_i32 = arith.constant 0 : i32
    %c0_i32_0 = arith.constant 0 : i32
    %c0_i32_1 = arith.constant 0 : i32
    return %c0_i32, %c0_i32_0 : i32, i32
  }
  func.func @transform_2(%arg0: i32) -> (i32, i32) {
    %c0_i32 = arith.constant 0 : i32
    %c0_i32_0 = arith.constant 0 : i32
    %c0_i32_1 = arith.constant 0 : i32
    return %c0_i32, %c0_i32_0 : i32, i32
  }
  func.func @transform_3(%arg0: i32) -> (i32, i32, i32, i32) {
    %c0_i32 = arith.constant 0 : i32
    %c0_i32_0 = arith.constant 0 : i32
    %c0_i32_1 = arith.constant 0 : i32
    %c0_i32_2 = arith.constant 0 : i32
    %c0_i32_3 = arith.constant 0 : i32
    return %c0_i32, %c0_i32_0, %c0_i32_1, %c0_i32_2 : i32, i32, i32, i32
  }
  func.func @transform_4(%arg0: i32) -> (i32, i32) {
    %c0_i32 = arith.constant 0 : i32
    %c0_i32_0 = arith.constant 0 : i32
    return %arg0, %c0_i32 : i32, i32
  }
  func.func @transform_5(%arg0: i32) -> (i32, i32, i32) {
    %c0_i32 = arith.constant 0 : i32
    %c0_i32_0 = arith.constant 0 : i32
    %c0_i32_1 = arith.constant 0 : i32
    return %arg0, %c0_i32, %c0_i32_0 : i32, i32, i32
  }
}

</mosaic_0001>

<llo_original>
// kernel: tpu_custom_call.1
$region0: #{tpu_custom_call.1}
  #allocation0 [shape = 'u32[]', space=smem, size = 0x4, offset = 0x4, fixed_abs, tag = 'smem constant byte address 0x4 - core index']
  #allocation1 [shape = 'u32[144,128]{1,0:T(1,128)}', space=vmem, size = 0x12000, scoped, tag = 'internal scratch']
  %s0 = inlined_call_operand.vmem [shape: f32[16,32], index: 0, kind: input, shape index: {}]
  %s1 = inlined_call_operand.vmem [shape: bf16[32,256], index: 1, kind: input, shape index: {}]
  %s2 = inlined_call_operand.vmem [shape: f32[1,256], index: 2, kind: input, shape index: {}]
  %s3 = inlined_call_operand.vmem [shape: bf16[3,2,128,8], index: 3, kind: input, shape index: {}]
  %s4 = inlined_call_operand.hbm [shape: f32[16,16], index: 4, kind: output, shape index: {0}]
  %s5 = inlined_call_operand.hbm [shape: f32[1,1,256], index: 5, kind: output, shape index: {1}]
  %6 = xla_tuple %s4, %s5
  %s7 = sld [smem:[#allocation0]]
  $region34: #{tpu_custom_call.1} parent=0
    _
  %s9 = ssub.s32 1, %s7
  %s10 = scalar_select 0, %s9, %s7
  $region1: #{tpu_custom_call.1} parent=0
    #allocation2 [shape = 'u8[8192]{0}', space=vmem, size = 0x2000, scoped, tag = 'output window, operand 0, single buffered']
    #allocation3 [shape = 's32[1]{0}', space=sflag, size = 0x4, scoped, tag = 'scoped memory for tpu_custom_call.1']
    #allocation4 [shape = 'u8[1024]{0}', space=vmem, size = 0x400, scoped, tag = 'output window, operand 1, single buffered']
    #allocation5 [shape = 's32[1]{0}', space=sflag, size = 0x4, scoped, tag = 'scoped memory for tpu_custom_call.1']
    %11 = vsyncpa [#allocation3], 0
    %12 = vsyncpa [#allocation5], 0
    // Predicated region
    $region2: #{tpu_custom_call.1} parent=1 // pred_check
      _
    $region3: #{tpu_custom_call.1} parent=1 // pred_check_branch
      %14 = sbr.rel (0) target = $region5
    $region4: #{tpu_custom_call.1} parent=1 // pred_region
      _
    $region5: #{tpu_custom_call.1} parent=1 // pred_fallthru
      _
    // Predicated region
    $region6: #{tpu_custom_call.1} parent=1 // pred_check
      _
    $region7: #{tpu_custom_call.1} parent=1 // pred_check_branch
      %16 = sbr.rel (0) target = $region9
    $region8: #{tpu_custom_call.1} parent=1 // pred_region
      _
    $region9: #{tpu_custom_call.1} parent=1 // pred_fallthru
      _
    // Predicated region
    $region10: #{tpu_custom_call.1} parent=1 // pred_check
      _
    $region11: #{tpu_custom_call.1} parent=1 // pred_check_branch
      %18 = sbr.rel (0) target = $region13
    $region12: #{tpu_custom_call.1} parent=1 // pred_region
      _
    $region13: #{tpu_custom_call.1} parent=1 // pred_fallthru
      _
    // Predicated region
    $region14: #{tpu_custom_call.1} parent=1 // pred_check
      _
    $region15: #{tpu_custom_call.1} parent=1 // pred_check_branch
      %20 = sbr.rel (0) target = $region17
    $region16: #{tpu_custom_call.1} parent=1 // pred_region
      _
    $region17: #{tpu_custom_call.1} parent=1 // pred_fallthru
      _
    %v22 = vld [vmem:[%s0] sm:$0xff]
    %v23 = vld [vmem:[%s0 + $0x8] sm:$0xff]
    %v24 = vpack.c.bf16 %v23, %v22
    %v25 = vld [vmem:[%s1] sm:$0xff]
    %v26 = vld [vmem:[%s1 + $0x8] sm:$0xff]
    %v27 = vld [vmem:[%s1 + $0x10] sm:$0xff]
    %v28 = vld [vmem:[%s1 + $0x18] sm:$0xff]
    %v29 = vld [vmem:[%s2] sm:$0x3]
    %v31 = vlaneseq
    %v32 = vshrl.u32 %v31, 7
    %v33 = vsub.s32 0, %v32
    %v34 = vrot.slane %v29, %v33
    %v35 = vlaneseq
    %v36 = vshrl.u32 %v35, 7
    %v37 = vsub.s32 1, %v36
    %v38 = vrot.slane %v29, %v37
    %v45 = vunpack.c.l.b16 %v25
    %v46 = vunpack.c.h.b16 %v25
    %v47 = vunpack.c.l.b16 %v26
    %v48 = vunpack.c.h.b16 %v26
    %v49 = vunpack.c.l.b16 %v27
    %v50 = vunpack.c.h.b16 %v27
    %v51 = vunpack.c.l.b16 %v28
    %v52 = vunpack.c.h.b16 %v28
    %v53 = vpack.c.b16 %v47, %v45
    %v54 = vpack.c.b16 %v48, %v46
    %v55 = vpack.c.b16 %v51, %v49
    %v56 = vpack.c.b16 %v52, %v50
    %vm61 = vcmask 261120
    %v63 = vsel %vm61, %v24, 0
    %65 = vmatprep.subr.bf16.mxu0 %v54
    %66 = vmatpush1.bf16.msra.mxu0 %v53
    %67 = vmatprep.subr.bf16.mxu0 %v56
    %68 = vmatpush1.bf16.msra.mxu0 %v55
    %69 = vmatprep.subr.bf16.mxu0 0
    %70 = vmatpush1.bf16.msra.mxu0 0
    %71 = vmatprep.subr.bf16.mxu0 0
    %72 = vmatpush1.bf16.msra.mxu0 0
    %73 = vmatprep.subr.bf16.mxu0 0
    %74 = vmatpush1.bf16.msra.mxu0 0
    %75 = vmatprep.subr.bf16.mxu0 0
    %76 = vmatpush1.bf16.msra.mxu0 0
    %77 = vmatprep.subr.bf16.mxu0 0
    %78 = vmatpush1.bf16.msra.mxu0 0
    %79 = vmatprep.subr.bf16.mxu0 0
    %80 = vmatpush1.bf16.msra.mxu0 0
    %81 = vmatprep.subr.bf16.mxu0 0
    %82 = vmatpush1.bf16.msra.mxu0 0
    %83 = vmatprep.subr.bf16.mxu0 0
    %84 = vmatpush1.bf16.msra.mxu0 0
    %85 = vmatprep.subr.bf16.mxu0 0
    %86 = vmatpush1.bf16.msra.mxu0 0
    %87 = vmatprep.subr.bf16.mxu0 0
    %88 = vmatpush1.bf16.msra.mxu0 0
    %89 = vmatprep.subr.bf16.mxu0 0
    %90 = vmatpush1.bf16.msra.mxu0 0
    %91 = vmatprep.subr.bf16.mxu0 0
    %92 = vmatpush1.bf16.msra.mxu0 0
    %93 = vmatprep.subr.bf16.mxu0 0
    %94 = vmatpush1.bf16.msra.mxu0 0
    %95 = vmatprep.subr.bf16.mxu0 0
    %96 = vmatpush1.bf16.msra.mxu0 0
    %97 = vmatprep.mubr.bf16.mxu0 0
    %98 = vmatmul.mubr.bf16.gmra.mrb[0].mxu0 %v63
    %v99 = vpop.f32.mrb[0].mxu0
    %v100 = vadd.f32 %v34, %v99
    %v101 = vpop.f32.mrb[0].mxu0
    %v102 = vadd.f32 %v38, %v101
    %v103 = vpop.f32.mrb[0].mxu0
    %v104 = vadd.f32 %v34, %v103
    %v105 = vpop.f32.mrb[0].mxu0
    %v106 = vadd.f32 %v38, %v105
    %107 = vdwg.mxu0
    %v108 = vlaneseq
    %v109 = vand.u32 %v108, 127
    %110 = vmax.xlane.f32.xlu0 %v100
    %v111 = vpop.xlane.xlu0 %110
    %112 = vmax.xlane.f32.xlu0 %v104
    %v113 = vpop.xlane.xlu0 %112
    %vm114 = vcmp.eq.f32.partialorder %v100, %v111
    %vm115 = vcmp.eq.f32.partialorder %v104, %v113
    %v116 = vsel %vm114, %v109, 128
    %v117 = vsel %vm115, %v109, 128
    %v118 = vand.u32 %v116, 65535
    %v119 = vshra.s32 %v116, 16
    %v120 = vcvt.s32.f32 %v118
    %v121 = vcvt.s32.f32 %v119
    %122 = vmin.xlane.f32.xlu0 %v121
    %v123 = vpop.xlane.xlu0 %122
    %vm124 = vcmp.eq.f32.partialorder %v121, %v123
    %v125 = vsel %vm124, %v120, inf
    %126 = vmin.xlane.f32.xlu0 %v125
    %v127 = vpop.xlane.xlu0 %126
    %v128 = vcvt.f32.s32 %v127
    %v129 = vcvt.f32.s32 %v123
    %v130 = vshll.u32 %v129, 16
    %v131 = vadd.s32 %v130, %v128
    %v132 = vand.u32 %v117, 65535
    %v133 = vshra.s32 %v117, 16
    %v134 = vcvt.s32.f32 %v132
    %v135 = vcvt.s32.f32 %v133
    %136 = vmin.xlane.f32.xlu0 %v135
    %v137 = vpop.xlane.xlu0 %136
    %vm138 = vcmp.eq.f32.partialorder %v135, %v137
    %v139 = vsel %vm138, %v134, inf
    %140 = vmin.xlane.f32.xlu0 %v139
    %v141 = vpop.xlane.xlu0 %140
    %v142 = vcvt.f32.s32 %v141
    %v143 = vcvt.f32.s32 %v137
    %v144 = vshll.u32 %v143, 16
    %v145 = vadd.s32 %v144, %v142
    %vm146 = vcmp.eq.s32.totalorder %v109, %v131
    %vm147 = vcmp.eq.s32.totalorder %v109, %v145
    %v148 = vsel %vm146, 1, 0
    %v149 = vsel %vm147, 1, 0
    %v150 = vcvt.s32.f32 %v148
    %v151 = vcvt.s32.f32 %v149
    %v152 = vadd.f32 %v150, %v151
    %v153 = vrot.slane %v152, 4
    %v154 = vadd.f32 %v152, %v153
    %v155 = vrot.slane %v154, 2
    %v156 = vadd.f32 %v154, %v155
    %v157 = vrot.slane %v156, 1
    %v158 = vadd.f32 %v156, %v157
    %v159 = vlaneseq
    %vm160 = vcmp.ge.s32.totalorder %v159, 0
    %vm161 = vcmp.lt.s32.totalorder %v159, 128
    %vm162 = vmand %vm160, %vm161
    %163 = vst.msk [vmem:[#allocation4] sm:$0x1] %vm162, %v158
    %v164 = vpack.c.bf16 %v151, %v150
    %v165 = vld [vmem:[%s3] sm:$0xf]
    %v166 = vld [vmem:[%s3 + $0x4] sm:$0xf]
    %v167 = vld [vmem:[%s3 + $0x8] sm:$0xf]
    %v168 = vld [vmem:[%s3 + $0xc] sm:$0xf]
    %v169 = vld [vmem:[%s3 + $0x10] sm:$0xf]
    %v170 = vld [vmem:[%s3 + $0x14] sm:$0xf]
    %v171 = vld [vmem:[%s3 + $0x18] sm:$0xf]
    %v172 = vld [vmem:[%s3 + $0x1c] sm:$0xf]
    %v173 = vld [vmem:[%s3 + $0x20] sm:$0xf]
    %v174 = vld [vmem:[%s3 + $0x24] sm:$0xf]
    %v175 = vld [vmem:[%s3 + $0x28] sm:$0xf]
    %v176 = vld [vmem:[%s3 + $0x2c] sm:$0xf]
    %v177 = vld [vmem:[%s3 + $0x30] sm:$0xf]
    %v178 = vld [vmem:[%s3 + $0x34] sm:$0xf]
    %v179 = vld [vmem:[%s3 + $0x38] sm:$0xf]
    %v180 = vld [vmem:[%s3 + $0x3c] sm:$0xf]
    %s181 = scalar_lea.vmem %s3, 128
    %v182 = vld [vmem:[%s181] sm:$0xf]
    %v183 = vld [vmem:[%s181 + $0x4] sm:$0xf]
    %v184 = vld [vmem:[%s181 + $0x8] sm:$0xf]
    %v185 = vld [vmem:[%s181 + $0xc] sm:$0xf]
    %v186 = vld [vmem:[%s181 + $0x10] sm:$0xf]
    %v187 = vld [vmem:[%s181 + $0x14] sm:$0xf]
    %v188 = vld [vmem:[%s181 + $0x18] sm:$0xf]
    %v189 = vld [vmem:[%s181 + $0x1c] sm:$0xf]
    %v190 = vld [vmem:[%s181 + $0x20] sm:$0xf]
    %v191 = vld [vmem:[%s181 + $0x24] sm:$0xf]
    %v192 = vld [vmem:[%s181 + $0x28] sm:$0xf]
    %v193 = vld [vmem:[%s181 + $0x2c] sm:$0xf]
    %v194 = vld [vmem:[%s181 + $0x30] sm:$0xf]
    %v195 = vld [vmem:[%s181 + $0x34] sm:$0xf]
    %v196 = vld [vmem:[%s181 + $0x38] sm:$0xf]
    %v197 = vld [vmem:[%s181 + $0x3c] sm:$0xf]
    %v214 = vunpack.c.l.b16 %v182
    %v215 = vunpack.c.l.b16 %v183
    %v216 = vunpack.c.l.b16 %v184
    %v217 = vunpack.c.l.b16 %v185
    %v218 = vunpack.c.l.b16 %v186
    %v219 = vunpack.c.l.b16 %v187
    %v220 = vunpack.c.l.b16 %v188
    %v221 = vunpack.c.l.b16 %v189
    %v222 = vunpack.c.l.b16 %v190
    %v223 = vunpack.c.l.b16 %v191
    %v224 = vunpack.c.l.b16 %v192
    %v225 = vunpack.c.l.b16 %v193
    %v226 = vunpack.c.l.b16 %v194
    %v227 = vunpack.c.l.b16 %v195
    %v228 = vunpack.c.l.b16 %v196
    %v229 = vunpack.c.l.b16 %v197
    %v230 = vpack.c.b16 %v215, %v214
    %v231 = vpack.c.b16 %v217, %v216
    %v232 = vpack.c.b16 %v219, %v218
    %v233 = vpack.c.b16 %v221, %v220
    %v234 = vpack.c.b16 %v223, %v222
    %v235 = vpack.c.b16 %v225, %v224
    %v236 = vpack.c.b16 %v227, %v226
    %v237 = vpack.c.b16 %v229, %v228
    %246 = vmatprep.subr.bf16.mxu0 0
    %247 = vmatpush1.bf16.msra.mxu0 %v230
    %248 = vmatprep.subr.bf16.mxu0 0
    %249 = vmatpush1.bf16.msra.mxu0 %v231
    %250 = vmatprep.subr.bf16.mxu0 0
    %251 = vmatpush1.bf16.msra.mxu0 %v232
    %252 = vmatprep.subr.bf16.mxu0 0
    %253 = vmatpush1.bf16.msra.mxu0 %v233
    %254 = vmatprep.subr.bf16.mxu0 0
    %255 = vmatpush1.bf16.msra.mxu0 %v234
    %256 = vmatprep.subr.bf16.mxu0 0
    %257 = vmatpush1.bf16.msra.mxu0 %v235
    %258 = vmatprep.subr.bf16.mxu0 0
    %259 = vmatpush1.bf16.msra.mxu0 %v236
    %260 = vmatprep.subr.bf16.mxu0 0
    %261 = vmatpush1.bf16.msra.mxu0 %v237
    %262 = vmatprep.subr.bf16.mxu0 0
    %263 = vmatpush1.bf16.msra.mxu0 0
    %264 = vmatprep.subr.bf16.mxu0 0
    %265 = vmatpush1.bf16.msra.mxu0 0
    %266 = vmatprep.subr.bf16.mxu0 0
    %267 = vmatpush1.bf16.msra.mxu0 0
    %268 = vmatprep.subr.bf16.mxu0 0
    %269 = vmatpush1.bf16.msra.mxu0 0
    %270 = vmatprep.subr.bf16.mxu0 0
    %271 = vmatpush1.bf16.msra.mxu0 0
    %272 = vmatprep.subr.bf16.mxu0 0
    %273 = vmatpush1.bf16.msra.mxu0 0
    %274 = vmatprep.subr.bf16.mxu0 0
    %275 = vmatpush1.bf16.msra.mxu0 0
    %276 = vmatprep.subr.bf16.mxu0 0
    %277 = vmatpush1.bf16.msra.mxu0 0
    %278 = vmatprep.mubr.bf16.mxu0 0
    %279 = vmatmul.mubr.bf16.gmra.mrb[0].mxu0 %v164
    %v280 = vpop.f32.mrb[0].mxu0
    %v281 = vadd.f32 0.0, %v280
    %v282 = vpop.f32.mrb[0].mxu0
    %v283 = vpop.f32.mrb[0].mxu0
    %v284 = vadd.f32 0.0, %v283
    %v285 = vpop.f32.mrb[0].mxu0
    %286 = vdwg.mxu0
    %v303 = vunpack.c.l.b16 %v165
    %v304 = vunpack.c.l.b16 %v166
    %v305 = vunpack.c.l.b16 %v167
    %v306 = vunpack.c.l.b16 %v168
    %v307 = vunpack.c.l.b16 %v169
    %v308 = vunpack.c.l.b16 %v170
    %v309 = vunpack.c.l.b16 %v171
    %v310 = vunpack.c.l.b16 %v172
    %v311 = vunpack.c.l.b16 %v173
    %v312 = vunpack.c.l.b16 %v174
    %v313 = vunpack.c.l.b16 %v175
    %v314 = vunpack.c.l.b16 %v176
    %v315 = vunpack.c.l.b16 %v177
    %v316 = vunpack.c.l.b16 %v178
    %v317 = vunpack.c.l.b16 %v179
    %v318 = vunpack.c.l.b16 %v180
    %v319 = vpack.c.b16 %v304, %v303
    %v320 = vpack.c.b16 %v306, %v305
    %v321 = vpack.c.b16 %v308, %v307
    %v322 = vpack.c.b16 %v310, %v309
    %v323 = vpack.c.b16 %v312, %v311
    %v324 = vpack.c.b16 %v314, %v313
    %v325 = vpack.c.b16 %v316, %v315
    %v326 = vpack.c.b16 %v318, %v317
    %335 = vmatprep.subr.bf16.mxu0 0
    %336 = vmatpush1.bf16.msra.mxu0 %v319
    %337 = vmatprep.subr.bf16.mxu0 0
    %338 = vmatpush1.bf16.msra.mxu0 %v320
    %339 = vmatprep.subr.bf16.mxu0 0
    %340 = vmatpush1.bf16.msra.mxu0 %v321
    %341 = vmatprep.subr.bf16.mxu0 0
    %342 = vmatpush1.bf16.msra.mxu0 %v322
    %343 = vmatprep.subr.bf16.mxu0 0
    %344 = vmatpush1.bf16.msra.mxu0 %v323
    %345 = vmatprep.subr.bf16.mxu0 0
    %346 = vmatpush1.bf16.msra.mxu0 %v324
    %347 = vmatprep.subr.bf16.mxu0 0
    %348 = vmatpush1.bf16.msra.mxu0 %v325
    %349 = vmatprep.subr.bf16.mxu0 0
    %350 = vmatpush1.bf16.msra.mxu0 %v326
    %351 = vmatprep.subr.bf16.mxu0 0
    %352 = vmatpush1.bf16.msra.mxu0 0
    %353 = vmatprep.subr.bf16.mxu0 0
    %354 = vmatpush1.bf16.msra.mxu0 0
    %355 = vmatprep.subr.bf16.mxu0 0
    %356 = vmatpush1.bf16.msra.mxu0 0
    %357 = vmatprep.subr.bf16.mxu0 0
    %358 = vmatpush1.bf16.msra.mxu0 0
    %359 = vmatprep.subr.bf16.mxu0 0
    %360 = vmatpush1.bf16.msra.mxu0 0
    %361 = vmatprep.subr.bf16.mxu0 0
    %362 = vmatpush1.bf16.msra.mxu0 0
    %363 = vmatprep.subr.bf16.mxu0 0
    %364 = vmatpush1.bf16.msra.mxu0 0
    %365 = vmatprep.subr.bf16.mxu0 0
    %366 = vmatpush1.bf16.msra.mxu0 0
    %367 = vmatprep.mubr.bf16.mxu0 0
    %368 = vmatmul.mubr.bf16.gmra.mrb[0].mxu0 %v164
    %v369 = vpop.f32.mrb[0].mxu0
    %v370 = vadd.f32 %v281, %v369
    %v371 = vpop.f32.mrb[0].mxu0
    %v372 = vpop.f32.mrb[0].mxu0
    %v373 = vadd.f32 %v284, %v372
    %v374 = vpop.f32.mrb[0].mxu0
    %375 = vdwg.mxu0
    %s376 = scalar_lea.vmem %s3, 256
    %v377 = vld [vmem:[%s376] sm:$0xf]
    %v378 = vld [vmem:[%s376 + $0x4] sm:$0xf]
    %v379 = vld [vmem:[%s376 + $0x8] sm:$0xf]
    %v380 = vld [vmem:[%s376 + $0xc] sm:$0xf]
    %v381 = vld [vmem:[%s376 + $0x10] sm:$0xf]
    %v382 = vld [vmem:[%s376 + $0x14] sm:$0xf]
    %v383 = vld [vmem:[%s376 + $0x18] sm:$0xf]
    %v384 = vld [vmem:[%s376 + $0x1c] sm:$0xf]
    %v385 = vld [vmem:[%s376 + $0x20] sm:$0xf]
    %v386 = vld [vmem:[%s376 + $0x24] sm:$0xf]
    %v387 = vld [vmem:[%s376 + $0x28] sm:$0xf]
    %v388 = vld [vmem:[%s376 + $0x2c] sm:$0xf]
    %v389 = vld [vmem:[%s376 + $0x30] sm:$0xf]
    %v390 = vld [vmem:[%s376 + $0x34] sm:$0xf]
    %v391 = vld [vmem:[%s376 + $0x38] sm:$0xf]
    %v392 = vld [vmem:[%s376 + $0x3c] sm:$0xf]
    %v409 = vunpack.c.l.b16 %v377
    %v410 = vunpack.c.l.b16 %v378
    %v411 = vunpack.c.l.b16 %v379
    %v412 = vunpack.c.l.b16 %v380
    %v413 = vunpack.c.l.b16 %v381
    %v414 = vunpack.c.l.b16 %v382
    %v415 = vunpack.c.l.b16 %v383
    %v416 = vunpack.c.l.b16 %v384
    %v417 = vunpack.c.l.b16 %v385
    %v418 = vunpack.c.l.b16 %v386
    %v419 = vunpack.c.l.b16 %v387
    %v420 = vunpack.c.l.b16 %v388
    %v421 = vunpack.c.l.b16 %v389
    %v422 = vunpack.c.l.b16 %v390
    %v423 = vunpack.c.l.b16 %v391
    %v424 = vunpack.c.l.b16 %v392
    %v425 = vpack.c.b16 %v410, %v409
    %v426 = vpack.c.b16 %v412, %v411
    %v427 = vpack.c.b16 %v414, %v413
    %v428 = vpack.c.b16 %v416, %v415
    %v429 = vpack.c.b16 %v418, %v417
    %v430 = vpack.c.b16 %v420, %v419
    %v431 = vpack.c.b16 %v422, %v421
    %v432 = vpack.c.b16 %v424, %v423
    %441 = vmatprep.subr.bf16.mxu0 0
    %442 = vmatpush1.bf16.msra.mxu0 %v425
    %443 = vmatprep.subr.bf16.mxu0 0
    %444 = vmatpush1.bf16.msra.mxu0 %v426
    %445 = vmatprep.subr.bf16.mxu0 0
    %446 = vmatpush1.bf16.msra.mxu0 %v427
    %447 = vmatprep.subr.bf16.mxu0 0
    %448 = vmatpush1.bf16.msra.mxu0 %v428
    %449 = vmatprep.subr.bf16.mxu0 0
    %450 = vmatpush1.bf16.msra.mxu0 %v429
    %451 = vmatprep.subr.bf16.mxu0 0
    %452 = vmatpush1.bf16.msra.mxu0 %v430
    %453 = vmatprep.subr.bf16.mxu0 0
    %454 = vmatpush1.bf16.msra.mxu0 %v431
    %455 = vmatprep.subr.bf16.mxu0 0
    %456 = vmatpush1.bf16.msra.mxu0 %v432
    %457 = vmatprep.subr.bf16.mxu0 0
    %458 = vmatpush1.bf16.msra.mxu0 0
    %459 = vmatprep.subr.bf16.mxu0 0
    %460 = vmatpush1.bf16.msra.mxu0 0
    %461 = vmatprep.subr.bf16.mxu0 0
    %462 = vmatpush1.bf16.msra.mxu0 0
    %463 = vmatprep.subr.bf16.mxu0 0
    %464 = vmatpush1.bf16.msra.mxu0 0
    %465 = vmatprep.subr.bf16.mxu0 0
    %466 = vmatpush1.bf16.msra.mxu0 0
    %467 = vmatprep.subr.bf16.mxu0 0
    %468 = vmatpush1.bf16.msra.mxu0 0
    %469 = vmatprep.subr.bf16.mxu0 0
    %470 = vmatpush1.bf16.msra.mxu0 0
    %471 = vmatprep.subr.bf16.mxu0 0
    %472 = vmatpush1.bf16.msra.mxu0 0
    %473 = vmatprep.mubr.bf16.mxu0 0
    %474 = vmatmul.mubr.bf16.gmra.mrb[0].mxu0 %v164
    %v475 = vpop.f32.mrb[0].mxu0
    %v476 = vadd.f32 0.0, %v475
    %v477 = vpop.f32.mrb[0].mxu0
    %v478 = vpop.f32.mrb[0].mxu0
    %v479 = vadd.f32 0.0, %v478
    %v480 = vpop.f32.mrb[0].mxu0
    %481 = vdwg.mxu0
    %v482 = vadd.f32 %v370, %v476
    %v483 = vadd.f32 %v373, %v479
    %vm484 = vcmask 64512
    %485 = vst.msk [vmem:[#allocation2] sm:$0xff] %vm484, %v482
    %486 = vst.msk [vmem:[#allocation2 + $0x8] sm:$0xff] %vm484, %v483
    %487 = vmax.xlane.f32.xlu0 %v102
    %v488 = vpop.xlane.xlu0 %487
    %489 = vmax.xlane.f32.xlu0 %v106
    %v490 = vpop.xlane.xlu0 %489
    %vm491 = vcmp.eq.f32.partialorder %v102, %v488
    %vm492 = vcmp.eq.f32.partialorder %v106, %v490
    %v493 = vsel %vm491, %v109, 128
    %v494 = vsel %vm492, %v109, 128
    %v495 = vand.u32 %v493, 65535
    %v496 = vshra.s32 %v493, 16
    %v497 = vcvt.s32.f32 %v495
    %v498 = vcvt.s32.f32 %v496
    %499 = vmin.xlane.f32.xlu0 %v498
    %v500 = vpop.xlane.xlu0 %499
    %vm501 = vcmp.eq.f32.partialorder %v498, %v500
    %v502 = vsel %vm501, %v497, inf
    %503 = vmin.xlane.f32.xlu0 %v502
    %v504 = vpop.xlane.xlu0 %503
    %v505 = vcvt.f32.s32 %v504
    %v506 = vcvt.f32.s32 %v500
    %v507 = vshll.u32 %v506, 16
    %v508 = vadd.s32 %v507, %v505
    %v509 = vand.u32 %v494, 65535
    %v510 = vshra.s32 %v494, 16
    %v511 = vcvt.s32.f32 %v509
    %v512 = vcvt.s32.f32 %v510
    %513 = vmin.xlane.f32.xlu0 %v512
    %v514 = vpop.xlane.xlu0 %513
    %vm515 = vcmp.eq.f32.partialorder %v512, %v514
    %v516 = vsel %vm515, %v511, inf
    %517 = vmin.xlane.f32.xlu0 %v516
    %v518 = vpop.xlane.xlu0 %517
    %v519 = vcvt.f32.s32 %v518
    %v520 = vcvt.f32.s32 %v514
    %v521 = vshll.u32 %v520, 16
    %v522 = vadd.s32 %v521, %v519
    %vm523 = vcmp.eq.s32.totalorder %v109, %v508
    %vm524 = vcmp.eq.s32.totalorder %v109, %v522
    %v525 = vsel %vm523, 1, 0
    %v526 = vsel %vm524, 1, 0
    %v527 = vcvt.s32.f32 %v525
    %v528 = vcvt.s32.f32 %v526
    %v529 = vadd.f32 %v527, %v528
    %v530 = vrot.slane %v529, 4
    %v531 = vadd.f32 %v529, %v530
    %v532 = vrot.slane %v531, 2
    %v533 = vadd.f32 %v531, %v532
    %v534 = vrot.slane %v533, 1
    %v535 = vadd.f32 %v533, %v534
    %536 = vst.msk [vmem:[#allocation4 + $0x1] sm:$0x1] %vm162, %v535
    %v537 = vpack.c.bf16 %v528, %v527
    %s538 = scalar_lea.vmem %s3, 64
    %v539 = vld [vmem:[%s538] sm:$0xf]
    %v540 = vld [vmem:[%s538 + $0x4] sm:$0xf]
    %v541 = vld [vmem:[%s538 + $0x8] sm:$0xf]
    %v542 = vld [vmem:[%s538 + $0xc] sm:$0xf]
    %v543 = vld [vmem:[%s538 + $0x10] sm:$0xf]
    %v544 = vld [vmem:[%s538 + $0x14] sm:$0xf]
    %v545 = vld [vmem:[%s538 + $0x18] sm:$0xf]
    %v546 = vld [vmem:[%s538 + $0x1c] sm:$0xf]
    %v547 = vld [vmem:[%s538 + $0x20] sm:$0xf]
    %v548 = vld [vmem:[%s538 + $0x24] sm:$0xf]
    %v549 = vld [vmem:[%s538 + $0x28] sm:$0xf]
    %v550 = vld [vmem:[%s538 + $0x2c] sm:$0xf]
    %v551 = vld [vmem:[%s538 + $0x30] sm:$0xf]
    %v552 = vld [vmem:[%s538 + $0x34] sm:$0xf]
    %v553 = vld [vmem:[%s538 + $0x38] sm:$0xf]
    %v554 = vld [vmem:[%s538 + $0x3c] sm:$0xf]
    %s555 = scalar_lea.vmem %s3, 192
    %v556 = vld [vmem:[%s555] sm:$0xf]
    %v557 = vld [vmem:[%s555 + $0x4] sm:$0xf]
    %v558 = vld [vmem:[%s555 + $0x8] sm:$0xf]
    %v559 = vld [vmem:[%s555 + $0xc] sm:$0xf]
    %v560 = vld [vmem:[%s555 + $0x10] sm:$0xf]
    %v561 = vld [vmem:[%s555 + $0x14] sm:$0xf]
    %v562 = vld [vmem:[%s555 + $0x18] sm:$0xf]
    %v563 = vld [vmem:[%s555 + $0x1c] sm:$0xf]
    %v564 = vld [vmem:[%s555 + $0x20] sm:$0xf]
    %v565 = vld [vmem:[%s555 + $0x24] sm:$0xf]
    %v566 = vld [vmem:[%s555 + $0x28] sm:$0xf]
    %v567 = vld [vmem:[%s555 + $0x2c] sm:$0xf]
    %v568 = vld [vmem:[%s555 + $0x30] sm:$0xf]
    %v569 = vld [vmem:[%s555 + $0x34] sm:$0xf]
    %v570 = vld [vmem:[%s555 + $0x38] sm:$0xf]
    %v571 = vld [vmem:[%s555 + $0x3c] sm:$0xf]
    %v588 = vunpack.c.l.b16 %v556
    %v589 = vunpack.c.l.b16 %v557
    %v590 = vunpack.c.l.b16 %v558
    %v591 = vunpack.c.l.b16 %v559
    %v592 = vunpack.c.l.b16 %v560
    %v593 = vunpack.c.l.b16 %v561
    %v594 = vunpack.c.l.b16 %v562
    %v595 = vunpack.c.l.b16 %v563
    %v596 = vunpack.c.l.b16 %v564
    %v597 = vunpack.c.l.b16 %v565
    %v598 = vunpack.c.l.b16 %v566
    %v599 = vunpack.c.l.b16 %v567
    %v600 = vunpack.c.l.b16 %v568
    %v601 = vunpack.c.l.b16 %v569
    %v602 = vunpack.c.l.b16 %v570
    %v603 = vunpack.c.l.b16 %v571
    %v604 = vpack.c.b16 %v589, %v588
    %v605 = vpack.c.b16 %v591, %v590
    %v606 = vpack.c.b16 %v593, %v592
    %v607 = vpack.c.b16 %v595, %v594
    %v608 = vpack.c.b16 %v597, %v596
    %v609 = vpack.c.b16 %v599, %v598
    %v610 = vpack.c.b16 %v601, %v600
    %v611 = vpack.c.b16 %v603, %v602
    %620 = vmatprep.subr.bf16.mxu0 0
    %621 = vmatpush1.bf16.msra.mxu0 %v604
    %622 = vmatprep.subr.bf16.mxu0 0
    %623 = vmatpush1.bf16.msra.mxu0 %v605
    %624 = vmatprep.subr.bf16.mxu0 0
    %625 = vmatpush1.bf16.msra.mxu0 %v606
    %626 = vmatprep.subr.bf16.mxu0 0
    %627 = vmatpush1.bf16.msra.mxu0 %v607
    %628 = vmatprep.subr.bf16.mxu0 0
    %629 = vmatpush1.bf16.msra.mxu0 %v608
    %630 = vmatprep.subr.bf16.mxu0 0
    %631 = vmatpush1.bf16.msra.mxu0 %v609
    %632 = vmatprep.subr.bf16.mxu0 0
    %633 = vmatpush1.bf16.msra.mxu0 %v610
    %634 = vmatprep.subr.bf16.mxu0 0
    %635 = vmatpush1.bf16.msra.mxu0 %v611
    %636 = vmatprep.subr.bf16.mxu0 0
    %637 = vmatpush1.bf16.msra.mxu0 0
    %638 = vmatprep.subr.bf16.mxu0 0
    %639 = vmatpush1.bf16.msra.mxu0 0
    %640 = vmatprep.subr.bf16.mxu0 0
    %641 = vmatpush1.bf16.msra.mxu0 0
    %642 = vmatprep.subr.bf16.mxu0 0
    %643 = vmatpush1.bf16.msra.mxu0 0
    %644 = vmatprep.subr.bf16.mxu0 0
    %645 = vmatpush1.bf16.msra.mxu0 0
    %646 = vmatprep.subr.bf16.mxu0 0
    %647 = vmatpush1.bf16.msra.mxu0 0
    %648 = vmatprep.subr.bf16.mxu0 0
    %649 = vmatpush1.bf16.msra.mxu0 0
    %650 = vmatprep.subr.bf16.mxu0 0
    %651 = vmatpush1.bf16.msra.mxu0 0
    %652 = vmatprep.mubr.bf16.mxu0 0
    %653 = vmatmul.mubr.bf16.gmra.mrb[0].mxu0 %v537
    %v654 = vpop.f32.mrb[0].mxu0
    %v655 = vadd.f32 0.0, %v654
    %v656 = vpop.f32.mrb[0].mxu0
    %v657 = vpop.f32.mrb[0].mxu0
    %v658 = vadd.f32 0.0, %v657
    %v659 = vpop.f32.mrb[0].mxu0
    %660 = vdwg.mxu0
    %v677 = vunpack.c.l.b16 %v539
    %v678 = vunpack.c.l.b16 %v540
    %v679 = vunpack.c.l.b16 %v541
    %v680 = vunpack.c.l.b16 %v542
    %v681 = vunpack.c.l.b16 %v543
    %v682 = vunpack.c.l.b16 %v544
    %v683 = vunpack.c.l.b16 %v545
    %v684 = vunpack.c.l.b16 %v546
    %v685 = vunpack.c.l.b16 %v547
    %v686 = vunpack.c.l.b16 %v548
    %v687 = vunpack.c.l.b16 %v549
    %v688 = vunpack.c.l.b16 %v550
    %v689 = vunpack.c.l.b16 %v551
    %v690 = vunpack.c.l.b16 %v552
    %v691 = vunpack.c.l.b16 %v553
    %v692 = vunpack.c.l.b16 %v554
    %v693 = vpack.c.b16 %v678, %v677
    %v694 = vpack.c.b16 %v680, %v679
    %v695 = vpack.c.b16 %v682, %v681
    %v696 = vpack.c.b16 %v684, %v683
    %v697 = vpack.c.b16 %v686, %v685
    %v698 = vpack.c.b16 %v688, %v687
    %v699 = vpack.c.b16 %v690, %v689
    %v700 = vpack.c.b16 %v692, %v691
    %709 = vmatprep.subr.bf16.mxu0 0
    %710 = vmatpush1.bf16.msra.mxu0 %v693
    %711 = vmatprep.subr.bf16.mxu0 0
    %712 = vmatpush1.bf16.msra.mxu0 %v694
    %713 = vmatprep.subr.bf16.mxu0 0
    %714 = vmatpush1.bf16.msra.mxu0 %v695
    %715 = vmatprep.subr.bf16.mxu0 0
    %716 = vmatpush1.bf16.msra.mxu0 %v696
    %717 = vmatprep.subr.bf16.mxu0 0
    %718 = vmatpush1.bf16.msra.mxu0 %v697
    %719 = vmatprep.subr.bf16.mxu0 0
    %720 = vmatpush1.bf16.msra.mxu0 %v698
    %721 = vmatprep.subr.bf16.mxu0 0
    %722 = vmatpush1.bf16.msra.mxu0 %v699
    %723 = vmatprep.subr.bf16.mxu0 0
    %724 = vmatpush1.bf16.msra.mxu0 %v700
    %725 = vmatprep.subr.bf16.mxu0 0
    %726 = vmatpush1.bf16.msra.mxu0 0
    %727 = vmatprep.subr.bf16.mxu0 0
    %728 = vmatpush1.bf16.msra.mxu0 0
    %729 = vmatprep.subr.bf16.mxu0 0
    %730 = vmatpush1.bf16.msra.mxu0 0
    %731 = vmatprep.subr.bf16.mxu0 0
    %732 = vmatpush1.bf16.msra.mxu0 0
    %733 = vmatprep.subr.bf16.mxu0 0
    %734 = vmatpush1.bf16.msra.mxu0 0
    %735 = vmatprep.subr.bf16.mxu0 0
    %736 = vmatpush1.bf16.msra.mxu0 0
    %737 = vmatprep.subr.bf16.mxu0 0
    %738 = vmatpush1.bf16.msra.mxu0 0
    %739 = vmatprep.subr.bf16.mxu0 0
    %740 = vmatpush1.bf16.msra.mxu0 0
    %741 = vmatprep.mubr.bf16.mxu0 0
    %742 = vmatmul.mubr.bf16.gmra.mrb[0].mxu0 %v537
    %v743 = vpop.f32.mrb[0].mxu0
    %v744 = vadd.f32 %v655, %v743
    %v745 = vpop.f32.mrb[0].mxu0
    %v746 = vpop.f32.mrb[0].mxu0
    %v747 = vadd.f32 %v658, %v746
    %v748 = vpop.f32.mrb[0].mxu0
    %749 = vdwg.mxu0
    %s750 = scalar_lea.vmem %s3, 320
    %v751 = vld [vmem:[%s750] sm:$0xf]
    %v752 = vld [vmem:[%s750 + $0x4] sm:$0xf]
    %v753 = vld [vmem:[%s750 + $0x8] sm:$0xf]
    %v754 = vld [vmem:[%s750 + $0xc] sm:$0xf]
    %v755 = vld [vmem:[%s750 + $0x10] sm:$0xf]
    %v756 = vld [vmem:[%s750 + $0x14] sm:$0xf]
    %v757 = vld [vmem:[%s750 + $0x18] sm:$0xf]
    %v758 = vld [vmem:[%s750 + $0x1c] sm:$0xf]
    %v759 = vld [vmem:[%s750 + $0x20] sm:$0xf]
    %v760 = vld [vmem:[%s750 + $0x24] sm:$0xf]
    %v761 = vld [vmem:[%s750 + $0x28] sm:$0xf]
    %v762 = vld [vmem:[%s750 + $0x2c] sm:$0xf]
    %v763 = vld [vmem:[%s750 + $0x30] sm:$0xf]
    %v764 = vld [vmem:[%s750 + $0x34] sm:$0xf]
    %v765 = vld [vmem:[%s750 + $0x38] sm:$0xf]
    %v766 = vld [vmem:[%s750 + $0x3c] sm:$0xf]
    %v783 = vunpack.c.l.b16 %v751
    %v784 = vunpack.c.l.b16 %v752
    %v785 = vunpack.c.l.b16 %v753
    %v786 = vunpack.c.l.b16 %v754
    %v787 = vunpack.c.l.b16 %v755
    %v788 = vunpack.c.l.b16 %v756
    %v789 = vunpack.c.l.b16 %v757
    %v790 = vunpack.c.l.b16 %v758
    %v791 = vunpack.c.l.b16 %v759
    %v792 = vunpack.c.l.b16 %v760
    %v793 = vunpack.c.l.b16 %v761
    %v794 = vunpack.c.l.b16 %v762
    %v795 = vunpack.c.l.b16 %v763
    %v796 = vunpack.c.l.b16 %v764
    %v797 = vunpack.c.l.b16 %v765
    %v798 = vunpack.c.l.b16 %v766
    %v799 = vpack.c.b16 %v784, %v783
    %v800 = vpack.c.b16 %v786, %v785
    %v801 = vpack.c.b16 %v788, %v787
    %v802 = vpack.c.b16 %v790, %v789
    %v803 = vpack.c.b16 %v792, %v791
    %v804 = vpack.c.b16 %v794, %v793
    %v805 = vpack.c.b16 %v796, %v795
    %v806 = vpack.c.b16 %v798, %v797
    %815 = vmatprep.subr.bf16.mxu0 0
    %816 = vmatpush1.bf16.msra.mxu0 %v799
    %817 = vmatprep.subr.bf16.mxu0 0
    %818 = vmatpush1.bf16.msra.mxu0 %v800
    %819 = vmatprep.subr.bf16.mxu0 0
    %820 = vmatpush1.bf16.msra.mxu0 %v801
    %821 = vmatprep.subr.bf16.mxu0 0
    %822 = vmatpush1.bf16.msra.mxu0 %v802
    %823 = vmatprep.subr.bf16.mxu0 0
    %824 = vmatpush1.bf16.msra.mxu0 %v803
    %825 = vmatprep.subr.bf16.mxu0 0
    %826 = vmatpush1.bf16.msra.mxu0 %v804
    %827 = vmatprep.subr.bf16.mxu0 0
    %828 = vmatpush1.bf16.msra.mxu0 %v805
    %829 = vmatprep.subr.bf16.mxu0 0
    %830 = vmatpush1.bf16.msra.mxu0 %v806
    %831 = vmatprep.subr.bf16.mxu0 0
    %832 = vmatpush1.bf16.msra.mxu0 0
    %833 = vmatprep.subr.bf16.mxu0 0
    %834 = vmatpush1.bf16.msra.mxu0 0
    %835 = vmatprep.subr.bf16.mxu0 0
    %836 = vmatpush1.bf16.msra.mxu0 0
    %837 = vmatprep.subr.bf16.mxu0 0
    %838 = vmatpush1.bf16.msra.mxu0 0
    %839 = vmatprep.subr.bf16.mxu0 0
    %840 = vmatpush1.bf16.msra.mxu0 0
    %841 = vmatprep.subr.bf16.mxu0 0
    %842 = vmatpush1.bf16.msra.mxu0 0
    %843 = vmatprep.subr.bf16.mxu0 0
    %844 = vmatpush1.bf16.msra.mxu0 0
    %845 = vmatprep.subr.bf16.mxu0 0
    %846 = vmatpush1.bf16.msra.mxu0 0
    %847 = vmatprep.mubr.bf16.mxu0 0
    %848 = vmatmul.mubr.bf16.gmra.mrb[0].mxu0 %v537
    %v849 = vpop.f32.mrb[0].mxu0
    %v850 = vadd.f32 0.0, %v849
    %v851 = vpop.f32.mrb[0].mxu0
    %v852 = vpop.f32.mrb[0].mxu0
    %v853 = vadd.f32 0.0, %v852
    %v854 = vpop.f32.mrb[0].mxu0
    %855 = vdwg.mxu0
    %v856 = vadd.f32 %v744, %v850
    %v857 = vadd.f32 %v747, %v853
    %860 = vrot.lane.b32.xlu0 %v856, 8
    %v861 = vpop.permute.xlu0 %860
    %862 = vrot.lane.b32.xlu0 %v857, 8
    %v863 = vpop.permute.xlu0 %862
    %vm866 = vcmask 130112
    %867 = vst.msk [vmem:[#allocation2] sm:$0xff] %vm866, %v861
    %868 = vst.msk [vmem:[#allocation2 + $0x8] sm:$0xff] %vm866, %v863
    // Predicated region
    $region18: #{tpu_custom_call.1} parent=1 // pred_check
      _
    $region19: #{tpu_custom_call.1} parent=1 // pred_check_branch
      %870 = sbr.rel (0) target = $region21
    $region20: #{tpu_custom_call.1} parent=1 // pred_region
      %s872 = ssub.s32 256, 256
      %873 = vsyncadd [#allocation3], %s872
      %s874 = sshll.u32 [#allocation2], 4
      %s875 = int_to_ptr.vmem [resolvable:$true] %s874
      %880 = dma.vmem_to_hbm [thread:$0]  %s875, 256, %s4, [#allocation3], 128, 128, 8
    $region21: #{tpu_custom_call.1} parent=1 // pred_fallthru
      _
    // Predicated region
    $region22: #{tpu_custom_call.1} parent=1 // pred_check
      _
    $region23: #{tpu_custom_call.1} parent=1 // pred_check_branch
      %882 = sbr.rel (0) target = $region25
    $region24: #{tpu_custom_call.1} parent=1 // pred_region
      %s884 = ssub.s32 32, 32
      %885 = vsyncadd [#allocation5], %s884
      %s887 = sshll.u32 [#allocation4], 4
      %s888 = int_to_ptr.vmem [resolvable:$true] %s887
      %890 = dma.vmem_to_hbm [thread:$0]  %s888, 32, %s5, [#allocation5]
    $region25: #{tpu_custom_call.1} parent=1 // pred_fallthru
      _
    // Predicated region
    $region26: #{tpu_custom_call.1} parent=1 // pred_check
      _
    $region27: #{tpu_custom_call.1} parent=1 // pred_check_branch
      %892 = sbr.rel (0) target = $region29
    $region28: #{tpu_custom_call.1} parent=1 // pred_region
      %893 = dma.done [#allocation3], 256
    $region29: #{tpu_custom_call.1} parent=1 // pred_fallthru
      _
    // Predicated region
    $region30: #{tpu_custom_call.1} parent=1 // pred_check
      _
    $region31: #{tpu_custom_call.1} parent=1 // pred_check_branch
      %895 = sbr.rel (0) target = $region33
    $region32: #{tpu_custom_call.1} parent=1 // pred_region
      %896 = dma.done [#allocation5], 32
    $region33: #{tpu_custom_call.1} parent=1 // pred_fallthru
      _
    %897 = vsyncpa [#allocation3], 1
    %898 = vsyncpa [#allocation5], 1

</llo_original>
